<compile_context>
chip_gen: v7x
topology: tpu7x:2x2x1
jax: 0.10.0
libtpu: 0.0.40
codegen_flags: <defaults>
</compile_context>

<pallas_src>
import jax
import jax.numpy as jnp
from jax.experimental import pallas as pl
from jax.experimental.pallas import tpu as pltpu

N_FEAT = 784
N_CLS = 10
N_PAD = 128          # lane-dense padded class dim (one full vreg lane width)
NEG_INF = -1e30      # bias for padded classes -> exp() underflows to exactly 0


def one_layer_kernel(x_ref, w_ref, b_ref, o_ref):
    """Fused linear + softmax(dim=1) for one batch tile.

    x_ref: (TB, 784)   activation tile in its native dtype (f32 or bf16)
    w_ref: (784, 128)  weight, zero-padded classes (compute dtype, e.g. bf16)
    b_ref: (1, 128)    f32 bias; padded classes hold -1e30 -> prob 0
    o_ref: (TB, 128)   softmax probabilities (padded classes are 0)
    """
    # Cast activations to the weight dtype *inside* the kernel: the VPU cast is
    # free in this HBM-bound kernel and avoids a separate XLA cast/copy pass.
    x = x_ref[...].astype(w_ref.dtype)

    # MXU matmul with f32 accumulation.
    logits = jnp.dot(x, w_ref[...],
                     preferred_element_type=jnp.float32) + b_ref[...]

    # Numerically stable softmax over the class axis (PyTorch dim=1).
    m = jnp.max(logits, axis=-1, keepdims=True)
    e = jnp.exp(logits - m)
    s = jnp.sum(e, axis=-1, keepdims=True)
    # approx=True lowers to the EUP vrcp slot -> keeps VALU slots free.
    o_ref[...] = (e * pl.reciprocal(s, approx=True)).astype(o_ref.dtype)


def prepare_params(w_t, b, compute_dtype=jnp.bfloat16):
    """Pad/cast the Linear params once (reuse across forward calls).

    w_t : (784, 10)  transpose of the PyTorch (10, 784) weight
    b   : (10,)      bias
    Returns (w_pad (784,128) compute_dtype, b_pad (1,128) f32).
    """
    w_pad = jnp.pad(w_t.astype(compute_dtype), ((0, 0), (0, N_PAD - N_CLS)))
    b_pad = jnp.concatenate(
        [b.astype(jnp.float32).reshape(1, N_CLS),
         jnp.full((1, N_PAD - N_CLS), NEG_INF, jnp.float32)], axis=1)
    return w_pad, b_pad


def one_layer_forward(x, w_pad, b_pad, *, tile_b=1024,
                      out_dtype=jnp.bfloat16, trim=True):
    """OneLayer forward: softmax(x.view(-1,784) @ W^T + b).

    x      : anything reshapeable to (B, 784), e.g. (B, 1, 28, 28); f32 or bf16
             (bf16 end-to-end is cheapest; f32 is cast in-kernel, no extra pass).
    w_pad  : (784, 128) padded weight from prepare_params
    b_pad  : (1, 128)   padded bias from prepare_params
    Returns (B, 10) probabilities if trim=True, else the padded (B, 128) block
    (padded classes are exactly 0) so the consumer can fuse the class slice.
    """
    x2d = x.reshape(-1, N_FEAT)          # layout-trivial; no cast, no pad
    B = x2d.shape[0]

    # Grid steps: >= cdiv(B, tile_b); >= 2 when there is enough work so the
    # "parallel" batch axis shards evenly across both v7x TensorCores.
    steps = pl.cdiv(B, int(tile_b))
    if B >= 16:
        steps = max(steps, 2)
    tile = max(8, ((pl.cdiv(B, steps) + 7) // 8) * 8)   # sublane multiple
    grid = (pl.cdiv(B, tile),)           # boundary block is masked by Pallas

    x_item = jnp.dtype(x2d.dtype).itemsize
    w_item = jnp.dtype(w_pad.dtype).itemsize
    o_item = jnp.dtype(out_dtype).itemsize

    cost = pl.CostEstimate(
        flops=2 * B * N_FEAT * N_PAD,
        transcendentals=B * N_PAD,
        bytes_accessed=(B * N_FEAT * x_item          # x read (dominant)
                        + N_FEAT * N_PAD * w_item    # weight
                        + N_PAD * 4                  # bias
                        + B * N_PAD * o_item))       # output write

    # Double-buffered VMEM footprint: 2x (x tile + out tile) + 2x params.
    vmem_est = (2 * tile * (N_FEAT * x_item + N_PAD * o_item)
                + 2 * (N_FEAT * N_PAD * w_item + N_PAD * 4))
    vmem_limit = int(min(max(int(vmem_est * 1.5), 16 * 2**20), 64 * 2**20))

    out = pl.pallas_call(
        one_layer_kernel,
        out_shape=jax.ShapeDtypeStruct((B, N_PAD), out_dtype),
        grid_spec=pltpu.PrefetchScalarGridSpec(
            num_scalar_prefetch=0,
            grid=grid,
            in_specs=[
                pl.BlockSpec((tile, N_FEAT), lambda i: (i, 0)),   # x tile
                # Constant block index -> weight/bias stay resident in VMEM.
                pl.BlockSpec((N_FEAT, N_PAD), lambda i: (0, 0)),  # weight
                pl.BlockSpec((1, N_PAD), lambda i: (0, 0)),       # bias
            ],
            out_specs=pl.BlockSpec((tile, N_PAD), lambda i: (i, 0)),
        ),
        compiler_params=pltpu.CompilerParams(
            dimension_semantics=("parallel",),
            vmem_limit_bytes=vmem_limit),
        cost_estimate=cost,
    )(x2d, w_pad, b_pad)

    if trim:
        # Separate XLA slice; perf-critical consumers should pass trim=False
        # and fuse the [:, :10] slice into their own (jit-ted) op instead.
        return out[:, :N_CLS]
    return out


if __name__ == "__main__":
    key = jax.random.PRNGKey(0)
    k_x, k_w, k_b = jax.random.split(key, 3)

    # Deliberately not a multiple of the batch tile -> exercises the masked
    # boundary block (no explicit padding anywhere in the wrapper).
    B = 20
    # NCHW input, as PyTorch would feed MNIST: (B, 1, 28, 28) -> view(-1, 784)
    x = jax.random.normal(k_x, (B, 1, 28, 28), dtype=jnp.float32)

    # Params matching nn.Linear(784, 10) init style
    # (uniform in [-1/sqrt(784), 1/sqrt(784)]). PyTorch weight is (10, 784);
    # we store the transpose (784, 10) for the kernel.
    bound = 1.0 / jnp.sqrt(784.0)
    w_t = jax.random.uniform(k_w, (784, 10), jnp.float32, -bound, bound)
    b = jax.random.uniform(k_b, (10,), jnp.float32, -bound, bound)

    # Pad/cast params once; reused across every forward call.
    w_pad, b_pad = prepare_params(w_t, b)

    fwd = jax.jit(one_layer_forward)
    out = jax.block_until_ready(fwd(x, w_pad, b_pad))

    # Reference with matching bf16 input/weight quantization, f32 accumulate.
    # (Kernel casts activations/weights to bf16; softmax math stays f32.)
    x_q = x.reshape(-1, 784).astype(jnp.bfloat16).astype(jnp.float32)
    w_q = w_t.astype(jnp.bfloat16).astype(jnp.float32)
    ref = jax.nn.softmax(x_q @ w_q + b, axis=1)

    out_f32 = out.astype(jnp.float32)
    assert out.shape == (B, 10)
    assert bool(jnp.allclose(out_f32, ref, atol=2e-2, rtol=2e-2)), (
        f"max abs err {float(jnp.max(jnp.abs(out_f32 - ref)))}")
    assert bool(jnp.allclose(jnp.sum(out_f32, axis=1), 1.0, atol=2e-2))

    print("KERNEL_OK")
</pallas_src>

<mosaic_0001>
module attributes {stable_mosaic.version = 11 : i64} {
  func.func @one_layer_kernel(%arg0: i32, %arg1: memref<16x784xf32, #tpu.memory_space<vmem>>, %arg2: memref<784x128xbf16, #tpu.memory_space<vmem>>, %arg3: memref<1x128xf32, #tpu.memory_space<vmem>>, %arg4: memref<16x128xbf16, #tpu.memory_space<vmem>>) attributes {dimension_semantics = [#tpu.dimension_semantics<parallel>], iteration_bounds = array<i64: 2>, scalar_prefetch = 0 : i64, scratch_operands = 0 : i64, tpu.core_type = #tpu.core_type<tc>, window_params = [{transform_indices = @transform_0, window_bounds = array<i64: 16, 784>}, {pipeline_mode = #tpu.pipeline_mode<synchronous>, transform_indices = @transform_1, window_bounds = array<i64: 784, 128>}, {pipeline_mode = #tpu.pipeline_mode<synchronous>, transform_indices = @transform_2, window_bounds = array<i64: 1, 128>}, {transform_indices = @transform_3, window_bounds = array<i64: 16, 128>}]} {
    %c0 = arith.constant 0 : index
    %c0_0 = arith.constant 0 : index
    %0 = vector.load %arg1[%c0, %c0_0] : memref<16x784xf32, #tpu.memory_space<vmem>>, vector<16x784xf32>
    %1 = arith.truncf %0 : vector<16x784xf32> to vector<16x784xbf16>
    %c0_1 = arith.constant 0 : index
    %c0_2 = arith.constant 0 : index
    %2 = vector.load %arg2[%c0_1, %c0_2] : memref<784x128xbf16, #tpu.memory_space<vmem>>, vector<784x128xbf16>
    %cst = arith.constant dense<0.000000e+00> : vector<16x128xf32>
    %3 = tpu.matmul %1, %2, %cst {dimension_numbers = #tpu.dot_dimension_numbers<[1], [0], [0], [1], [0, 0, 1, 1], [], []>} : vector<16x784xbf16>, vector<784x128xbf16>, vector<16x128xf32> -> vector<16x128xf32>
    %c0_3 = arith.constant 0 : index
    %c0_4 = arith.constant 0 : index
    %4 = vector.load %arg3[%c0_3, %c0_4] : memref<1x128xf32, #tpu.memory_space<vmem>>, vector<1x128xf32>
    %5 = vector.broadcast %4 : vector<1x128xf32> to vector<16x128xf32>
    %6 = arith.addf %3, %5 : vector<16x128xf32>
    %cst_5 = arith.constant dense<0xFF800000> : vector<16xf32>
    %7 = vector.multi_reduction <maximumf>, %6, %cst_5 [1] : vector<16x128xf32> to vector<16xf32>
    %8 = vector.shape_cast %7 : vector<16xf32> to vector<16x1xf32>
    %9 = vector.broadcast %8 : vector<16x1xf32> to vector<16x128xf32>
    %10 = arith.subf %6, %9 : vector<16x128xf32>
    %11 = math.exp %10 : vector<16x128xf32>
    %cst_6 = arith.constant dense<0.000000e+00> : vector<16xf32>
    %12 = vector.multi_reduction <add>, %11, %cst_6 [1] : vector<16x128xf32> to vector<16xf32>
    %13 = vector.shape_cast %12 : vector<16xf32> to vector<16x1xf32>
    %14 = tpu.reciprocal %13 {approx = true} : vector<16x1xf32> -> vector<16x1xf32>
    %15 = vector.broadcast %14 : vector<16x1xf32> to vector<16x128xf32>
    %16 = arith.mulf %11, %15 : vector<16x128xf32>
    %17 = arith.truncf %16 : vector<16x128xf32> to vector<16x128xbf16>
    %c0_7 = arith.constant 0 : index
    %c0_8 = arith.constant 0 : index
    %18 = vector.load %arg4[%c0_7, %c0_8] : memref<16x128xbf16, #tpu.memory_space<vmem>>, vector<16x128xbf16>
    tpu.vector_store %arg4[%c0_7, %c0_8], %17 {strides = array<i32>} : memref<16x128xbf16, #tpu.memory_space<vmem>>, vector<16x128xbf16>,
    return
  }
  func.func @transform_0(%arg0: i32) -> (i32, i32) {
    %c0_i32 = arith.constant 0 : i32
    %c0_i32_0 = arith.constant 0 : i32
    return %arg0, %c0_i32 : i32, i32
  }
  func.func @transform_1(%arg0: i32) -> (i32, i32) {
    %c0_i32 = arith.constant 0 : i32
    %c0_i32_0 = arith.constant 0 : i32
    %c0_i32_1 = arith.constant 0 : i32
    return %c0_i32, %c0_i32_0 : i32, i32
  }
  func.func @transform_2(%arg0: i32) -> (i32, i32) {
    %c0_i32 = arith.constant 0 : i32
    %c0_i32_0 = arith.constant 0 : i32
    %c0_i32_1 = arith.constant 0 : i32
    return %c0_i32, %c0_i32_0 : i32, i32
  }
  func.func @transform_3(%arg0: i32) -> (i32, i32) {
    %c0_i32 = arith.constant 0 : i32
    %c0_i32_0 = arith.constant 0 : i32
    return %arg0, %c0_i32 : i32, i32
  }
}

</mosaic_0001>

<llo_original>
// kernel: one_layer_forward.1
$region0: #{one_layer_forward.1}
  #allocation0 [shape = 'u32[]', space=smem, size = 0x4, offset = 0x4, fixed_abs, tag = 'smem constant byte address 0x4 - core index']
  #allocation1 [shape = 'u32[144,128]{1,0:T(1,128)}', space=vmem, size = 0x12000, scoped, tag = 'internal scratch']
  %s0 = inlined_call_operand.vmem [shape: f32[20,784], index: 0, kind: input, shape index: {}]
  %s1 = inlined_call_operand.vmem [shape: bf16[784,128], index: 1, kind: input, shape index: {}]
  %s2 = inlined_call_operand.vmem [shape: f32[1,128], index: 2, kind: input, shape index: {}]
  %s3 = inlined_call_operand.vmem [shape: bf16[20,128], index: 3, kind: output, shape index: {}]
  %s4 = sld [smem:[#allocation0]]
  $region89: #{one_layer_forward.1} parent=0
    _
  %s6 = ssub.s32 1, %s4
  %s7 = scalar_select 0, %s6, %s4
  $region1: #{one_layer_forward.1} parent=0
    #allocation2 [shape = 'u8[8192]{0}', space=vmem, size = 0x2000, scoped, tag = 'output window, operand 0']
    loop: start=0, step=1, limit=4
    $region2: #{one_layer_forward.1} parent=1 // loop_pre_header
      _
    $region3: #{one_layer_forward.1} parent=1 // loop_header
      %s9 = sphi 0, %s13
      %p10 = scmp.ge.s32.totalorder %s9, 4
      %s19 = sphi 0, %s21
      %s22 = sphi 0, %s19
      %s23 = sphi 0, %s22
      %s39 = sphi 0, %s23
      %s43 = sphi 0, %s43
      %s45 = sphi 0, %s43
      %s46 = sphi 0, %s45
      %s60 = sphi 0, %s46
      %s64 = sphi 0, %s64
      %s66 = sphi 0, %s64
      %s67 = sphi 0, %s66
      %s81 = sphi 0, %s67
      %s87 = sphi 0, %s89
      %s90 = sphi 0, %s87
      %s91 = sphi 0, %s90
      %s107 = sphi 0, %s91
    $region4: #{one_layer_forward.1} parent=1 // loop_header_branch
      %12 = sbr.rel (%p10) target = $region8
    $region5: #{one_layer_forward.1} parent=1 // loop_body
      %s14 = ssub.s32 %s9, 1
      %s15 = ssub.s32 %s9, 2
      %s16 = sadd.s32 %s9, 1
      %s17 = ssub.s32 %s9, %s16
      %p18 = scmp.eq.s32.totalorder %s17, 0
      %s20 = sadd.s32 %s19, 1
      %s21 = scalar_select %p18, %s19, %s20
      %p24 = pneg %p18
      %p25 = scmp.eq.s32.totalorder %s9, 1
      %p26 = por %p24, %p25
      %p27 = scmp.ne.s32.totalorder %s19, %s22
      %p28 = scmp.eq.s32.totalorder %s9, 0
      %p29 = por %p27, %p28
      %p30 = scmp.ne.s32.totalorder %s19, %s22
      %p31 = scmp.eq.s32.totalorder %s14, 1
      %p32 = por %p30, %p31
      %p33 = scmp.ne.s32.totalorder %s22, %s23
      %p34 = scmp.eq.s32.totalorder %s14, 0
      %p35 = por %p33, %p34
      %p36 = scmp.ne.s32.totalorder %s22, %s23
      %p37 = scmp.eq.s32.totalorder %s15, 1
      %p38 = por %p36, %p37
      %p40 = scmp.ne.s32.totalorder %s23, %s39
      %p41 = scmp.eq.s32.totalorder %s15, 0
      %p42 = por %p40, %p41
      %s44 = sadd.s32 %s43, 1
      %p47 = scmp.eq.s32.totalorder %s9, 1
      %p48 = scmp.ne.s32.totalorder %s43, %s45
      %p49 = scmp.eq.s32.totalorder %s9, 0
      %p50 = por %p48, %p49
      %p51 = scmp.ne.s32.totalorder %s43, %s45
      %p52 = scmp.eq.s32.totalorder %s14, 1
      %p53 = por %p51, %p52
      %p54 = scmp.ne.s32.totalorder %s45, %s46
      %p55 = scmp.eq.s32.totalorder %s14, 0
      %p56 = por %p54, %p55
      %p57 = scmp.ne.s32.totalorder %s45, %s46
      %p58 = scmp.eq.s32.totalorder %s15, 1
      %p59 = por %p57, %p58
      %p61 = scmp.ne.s32.totalorder %s46, %s60
      %p62 = scmp.eq.s32.totalorder %s15, 0
      %p63 = por %p61, %p62
      %s65 = sadd.s32 %s64, 1
      %p68 = scmp.eq.s32.totalorder %s9, 1
      %p69 = scmp.ne.s32.totalorder %s64, %s66
      %p70 = scmp.eq.s32.totalorder %s9, 0
      %p71 = por %p69, %p70
      %p72 = scmp.ne.s32.totalorder %s64, %s66
      %p73 = scmp.eq.s32.totalorder %s14, 1
      %p74 = por %p72, %p73
      %p75 = scmp.ne.s32.totalorder %s66, %s67
      %p76 = scmp.eq.s32.totalorder %s14, 0
      %p77 = por %p75, %p76
      %p78 = scmp.ne.s32.totalorder %s66, %s67
      %p79 = scmp.eq.s32.totalorder %s15, 1
      %p80 = por %p78, %p79
      %p82 = scmp.ne.s32.totalorder %s67, %s81
      %p83 = scmp.eq.s32.totalorder %s15, 0
      %p84 = por %p82, %p83
      %s85 = ssub.s32 %s9, %s16
      %p86 = scmp.eq.s32.totalorder %s85, 0
      %s88 = sadd.s32 %s87, 1
      %s89 = scalar_select %p86, %s87, %s88
      %p92 = pneg %p86
      %p93 = scmp.eq.s32.totalorder %s9, 1
      %p94 = por %p92, %p93
      %p95 = scmp.ne.s32.totalorder %s87, %s90
      %p96 = scmp.eq.s32.totalorder %s9, 0
      %p97 = por %p95, %p96
      %p98 = scmp.ne.s32.totalorder %s87, %s90
      %p99 = scmp.eq.s32.totalorder %s14, 1
      %p100 = por %p98, %p99
      %p101 = scmp.ne.s32.totalorder %s90, %s91
      %p102 = scmp.eq.s32.totalorder %s14, 0
      %p103 = por %p101, %p102
      %p104 = scmp.ne.s32.totalorder %s90, %s91
      %p105 = scmp.eq.s32.totalorder %s15, 1
      %p106 = por %p104, %p105
      %p108 = scmp.ne.s32.totalorder %s91, %s107
      %p109 = scmp.eq.s32.totalorder %s15, 0
      %p110 = por %p108, %p109
      %p111 = scmp.le.s32.totalorder 1, %s9
      %p112 = scmp.lt.s32.totalorder %s9, 3
      %p113 = pnand %p111, %p112
      %p114 = pneg %p113
      // Predicated region
      $region9: #{one_layer_forward.1} parent=5 // pred_check
        _
      $region10: #{one_layer_forward.1} parent=5 // pred_check_branch
        %116 = sbr.rel (%p113) target = $region12
      $region11: #{one_layer_forward.1} parent=5 // pred_region
        %s117 = ssub.s32 %s9, 1
        // Predicated region
        $region13: #{one_layer_forward.1} parent=11 // pred_check
          %p118 = pneg %p56
        $region14: #{one_layer_forward.1} parent=11 // pred_check_branch
          %120 = sbr.rel (%p118) target = $region16
        $region15: #{one_layer_forward.1} parent=11 // pred_region
          _
        $region16: #{one_layer_forward.1} parent=11 // pred_fallthru
          _
        // Predicated region
        $region17: #{one_layer_forward.1} parent=11 // pred_check
          %p121 = pneg %p77
        $region18: #{one_layer_forward.1} parent=11 // pred_check_branch
          %123 = sbr.rel (%p121) target = $region20
        $region19: #{one_layer_forward.1} parent=11 // pred_region
          _
        $region20: #{one_layer_forward.1} parent=11 // pred_fallthru
          _
      $region12: #{one_layer_forward.1} parent=5 // pred_fallthru
        _
      %p124 = scmp.lt.s32.totalorder %s9, 2
      // Predicated region
      $region21: #{one_layer_forward.1} parent=5 // pred_check
        %p125 = pneg %p124
      $region22: #{one_layer_forward.1} parent=5 // pred_check_branch
        %127 = sbr.rel (%p125) target = $region24
      $region23: #{one_layer_forward.1} parent=5 // pred_region
        // Predicated region
        $region25: #{one_layer_forward.1} parent=23 // pred_check
          %p128 = pneg %p29
        $region26: #{one_layer_forward.1} parent=23 // pred_check_branch
          %130 = sbr.rel (%p128) target = $region28
        $region27: #{one_layer_forward.1} parent=23 // pred_region
          %s131 = smul.u32 2, %s9
          %s132 = ssub.s32 3, %s131
          %p133 = scmp.lt.s32.totalorder %s132, 2
          %s134 = scalar_select %p133, %s132, 2
          %s135 = smul.u32 128, %s134
          %s136 = smul.u32 %s135, 7
          %p137 = scmp.lt.s32.totalorder %s131, 2
          %s138 = scalar_select %p137, %s131, 2
          %s139 = smul.addr %s138, 7
          %s140 = smul.addr %s139, 8
          %s141 = scalar_lea.vmem %s0, %s140
          %s142 = smul.u32 2, %s9
          %s143 = ssub.s32 3, %s142
          %p144 = scmp.lt.s32.totalorder %s143, 2
          %s145 = scalar_select %p144, %s143, 2
          %s146 = smul.u32 128, %s145
          %s147 = smul.u32 %s146, 7
        $region28: #{one_layer_forward.1} parent=23 // pred_fallthru
          _
      $region24: #{one_layer_forward.1} parent=5 // pred_fallthru
        _
      %p148 = scmp.le.s32.totalorder 1, %s9
      %p149 = scmp.lt.s32.totalorder %s9, 3
      %p150 = pnand %p148, %p149
      %p151 = pneg %p150
      // Predicated region
      $region29: #{one_layer_forward.1} parent=5 // pred_check
        _
      $region30: #{one_layer_forward.1} parent=5 // pred_check_branch
        %153 = sbr.rel (%p150) target = $region32
      $region31: #{one_layer_forward.1} parent=5 // pred_region
        %s154 = ssub.s32 %s9, 1
        %s155 = smul.u32 2, %s14
        %s156 = ssub.s32 3, %s155
        %p157 = scmp.lt.s32.totalorder %s156, 2
        %s158 = scalar_select %p157, %s156, 2
        %s159 = smul.u32 128, %s158
        %s160 = smul.u32 %s159, 7
        %p161 = scmp.lt.s32.totalorder %s155, 2
        %s162 = scalar_select %p161, %s155, 2
        %s163 = smul.addr %s162, 7
        %s164 = smul.addr %s163, 8
        %s165 = scalar_lea.vmem %s0, %s164
        %p166 = pneg %p35
        %p167 = pneg %p32
        %p168 = pneg %p56
        %p169 = pneg %p53
        %p170 = pneg %p77
        %p171 = pneg %p74
        %p172 = pneg %p103
        %p173 = pneg %p100
        %s174 = sand.u32 %s90, 1
        %s175 = sand.u32 %s90, 1
        %s176 = smul.addr %s175, 8
        %s177 = scalar_lea.vmem [#allocation2], %s176
        %s178 = smul.u32 2, %s14
        %s179 = ssub.s32 3, %s178
        %p180 = scmp.lt.s32.totalorder %s179, 2
        %s181 = scalar_select %p180, %s179, 2
        %s182 = smul.u32 128, %s181
        %s183 = smul.u32 %s182, 7
        %p184 = scmp.lt.s32.totalorder %s178, 2
        %s185 = scalar_select %p184, %s178, 2
        %s186 = smul.addr %s185, 7
        %s187 = smul.addr %s186, 8
        %s188 = scalar_lea.vmem %s0, %s187
        %s189 = smul.u32 2, %s14
        %s190 = ssub.s32 3, %s189
        %p191 = scmp.lt.s32.totalorder %s190, 2
        %s192 = scalar_select %p191, %s190, 2
        %s193 = smul.u32 128, %s192
        %s194 = smul.u32 %s193, 7
        %s195 = smul.u32 2, %s14
        %s196 = ssub.s32 3, %s195
        %p197 = scmp.lt.s32.totalorder %s196, 2
        %s198 = scalar_select %p197, %s196, 2
        %s199 = smul.u32 64, %s198
        %v201 = vld [vmem:[%s188] sm:$0xff]
        %v202 = vld [vmem:[%s188 + $0x8] sm:$0xff]
        %v203 = vld [vmem:[%s188 + $0x10] sm:$0xff]
        %v204 = vld [vmem:[%s188 + $0x18] sm:$0xff]
        %v205 = vld [vmem:[%s188 + $0x20] sm:$0xff]
        %v206 = vld [vmem:[%s188 + $0x28] sm:$0xff]
        %v207 = vld [vmem:[%s188 + $0x30] sm:$0xff]
        %v208 = vld [vmem:[%s188 + $0x38] sm:$0xff]
        %v209 = vld [vmem:[%s188 + $0x40] sm:$0xff]
        %v210 = vld [vmem:[%s188 + $0x48] sm:$0xff]
        %v211 = vld [vmem:[%s188 + $0x50] sm:$0xff]
        %v212 = vld [vmem:[%s188 + $0x58] sm:$0xff]
        %v213 = vld [vmem:[%s188 + $0x60] sm:$0xff]
        %v214 = vld [vmem:[%s188 + $0x68] sm:$0xff]
        %v215 = vpack.c.bf16 %v208, %v201
        %v216 = vpack.c.bf16 %v209, %v202
        %v217 = vpack.c.bf16 %v210, %v203
        %v218 = vpack.c.bf16 %v211, %v204
        %v219 = vpack.c.bf16 %v212, %v205
        %v220 = vpack.c.bf16 %v213, %v206
        %v221 = vpack.c.bf16 %v214, %v207
        %v222 = vld [vmem:[%s1] sm:$0xf]
        %v223 = vld [vmem:[%s1 + $0x4] sm:$0xf]
        %v224 = vld [vmem:[%s1 + $0x8] sm:$0xf]
        %v225 = vld [vmem:[%s1 + $0xc] sm:$0xf]
        %v226 = vld [vmem:[%s1 + $0x10] sm:$0xf]
        %v227 = vld [vmem:[%s1 + $0x14] sm:$0xf]
        %v228 = vld [vmem:[%s1 + $0x18] sm:$0xf]
        %v229 = vld [vmem:[%s1 + $0x1c] sm:$0xf]
        %v230 = vld [vmem:[%s1 + $0x20] sm:$0xf]
        %v231 = vld [vmem:[%s1 + $0x24] sm:$0xf]
        %v232 = vld [vmem:[%s1 + $0x28] sm:$0xf]
        %v233 = vld [vmem:[%s1 + $0x2c] sm:$0xf]
        %v234 = vld [vmem:[%s1 + $0x30] sm:$0xf]
        %v235 = vld [vmem:[%s1 + $0x34] sm:$0xf]
        %v236 = vld [vmem:[%s1 + $0x38] sm:$0xf]
        %v237 = vld [vmem:[%s1 + $0x3c] sm:$0xf]
        %v238 = vld [vmem:[%s1 + $0x40] sm:$0xf]
        %v239 = vld [vmem:[%s1 + $0x44] sm:$0xf]
        %v240 = vld [vmem:[%s1 + $0x48] sm:$0xf]
        %v241 = vld [vmem:[%s1 + $0x4c] sm:$0xf]
        %v242 = vld [vmem:[%s1 + $0x50] sm:$0xf]
        %v243 = vld [vmem:[%s1 + $0x54] sm:$0xf]
        %v244 = vld [vmem:[%s1 + $0x58] sm:$0xf]
        %v245 = vld [vmem:[%s1 + $0x5c] sm:$0xf]
        %v246 = vld [vmem:[%s1 + $0x60] sm:$0xf]
        %v247 = vld [vmem:[%s1 + $0x64] sm:$0xf]
        %v248 = vld [vmem:[%s1 + $0x68] sm:$0xf]
        %v249 = vld [vmem:[%s1 + $0x6c] sm:$0xf]
        %v250 = vld [vmem:[%s1 + $0x70] sm:$0xf]
        %v251 = vld [vmem:[%s1 + $0x74] sm:$0xf]
        %v252 = vld [vmem:[%s1 + $0x78] sm:$0xf]
        %v253 = vld [vmem:[%s1 + $0x7c] sm:$0xf]
        %v254 = vld [vmem:[%s1 + $0x80] sm:$0xf]
        %v255 = vld [vmem:[%s1 + $0x84] sm:$0xf]
        %v256 = vld [vmem:[%s1 + $0x88] sm:$0xf]
        %v257 = vld [vmem:[%s1 + $0x8c] sm:$0xf]
        %v258 = vld [vmem:[%s1 + $0x90] sm:$0xf]
        %v259 = vld [vmem:[%s1 + $0x94] sm:$0xf]
        %v260 = vld [vmem:[%s1 + $0x98] sm:$0xf]
        %v261 = vld [vmem:[%s1 + $0x9c] sm:$0xf]
        %v262 = vld [vmem:[%s1 + $0xa0] sm:$0xf]
        %v263 = vld [vmem:[%s1 + $0xa4] sm:$0xf]
        %v264 = vld [vmem:[%s1 + $0xa8] sm:$0xf]
        %v265 = vld [vmem:[%s1 + $0xac] sm:$0xf]
        %v266 = vld [vmem:[%s1 + $0xb0] sm:$0xf]
        %v267 = vld [vmem:[%s1 + $0xb4] sm:$0xf]
        %v268 = vld [vmem:[%s1 + $0xb8] sm:$0xf]
        %v269 = vld [vmem:[%s1 + $0xbc] sm:$0xf]
        %v270 = vld [vmem:[%s1 + $0xc0] sm:$0xf]
        %v271 = vld [vmem:[%s1 + $0xc4] sm:$0xf]
        %v272 = vld [vmem:[%s1 + $0xc8] sm:$0xf]
        %v273 = vld [vmem:[%s1 + $0xcc] sm:$0xf]
        %v274 = vld [vmem:[%s1 + $0xd0] sm:$0xf]
        %v275 = vld [vmem:[%s1 + $0xd4] sm:$0xf]
        %v276 = vld [vmem:[%s1 + $0xd8] sm:$0xf]
        %v277 = vld [vmem:[%s1 + $0xdc] sm:$0xf]
        %v278 = vld [vmem:[%s1 + $0xe0] sm:$0xf]
        %v279 = vld [vmem:[%s1 + $0xe4] sm:$0xf]
        %v280 = vld [vmem:[%s1 + $0xe8] sm:$0xf]
        %v281 = vld [vmem:[%s1 + $0xec] sm:$0xf]
        %v282 = vld [vmem:[%s1 + $0xf0] sm:$0xf]
        %v283 = vld [vmem:[%s1 + $0xf4] sm:$0xf]
        %v284 = vld [vmem:[%s1 + $0xf8] sm:$0xf]
        %v285 = vld [vmem:[%s1 + $0xfc] sm:$0xf]
        %v286 = vld [vmem:[%s1 + $0x100] sm:$0xf]
        %v287 = vld [vmem:[%s1 + $0x104] sm:$0xf]
        %v288 = vld [vmem:[%s1 + $0x108] sm:$0xf]
        %v289 = vld [vmem:[%s1 + $0x10c] sm:$0xf]
        %v290 = vld [vmem:[%s1 + $0x110] sm:$0xf]
        %v291 = vld [vmem:[%s1 + $0x114] sm:$0xf]
        %v292 = vld [vmem:[%s1 + $0x118] sm:$0xf]
        %v293 = vld [vmem:[%s1 + $0x11c] sm:$0xf]
        %v294 = vld [vmem:[%s1 + $0x120] sm:$0xf]
        %v295 = vld [vmem:[%s1 + $0x124] sm:$0xf]
        %v296 = vld [vmem:[%s1 + $0x128] sm:$0xf]
        %v297 = vld [vmem:[%s1 + $0x12c] sm:$0xf]
        %v298 = vld [vmem:[%s1 + $0x130] sm:$0xf]
        %v299 = vld [vmem:[%s1 + $0x134] sm:$0xf]
        %v300 = vld [vmem:[%s1 + $0x138] sm:$0xf]
        %v301 = vld [vmem:[%s1 + $0x13c] sm:$0xf]
        %v302 = vld [vmem:[%s1 + $0x140] sm:$0xf]
        %v303 = vld [vmem:[%s1 + $0x144] sm:$0xf]
        %v304 = vld [vmem:[%s1 + $0x148] sm:$0xf]
        %v305 = vld [vmem:[%s1 + $0x14c] sm:$0xf]
        %v306 = vld [vmem:[%s1 + $0x150] sm:$0xf]
        %v307 = vld [vmem:[%s1 + $0x154] sm:$0xf]
        %v308 = vld [vmem:[%s1 + $0x158] sm:$0xf]
        %v309 = vld [vmem:[%s1 + $0x15c] sm:$0xf]
        %v310 = vld [vmem:[%s1 + $0x160] sm:$0xf]
        %v311 = vld [vmem:[%s1 + $0x164] sm:$0xf]
        %v312 = vld [vmem:[%s1 + $0x168] sm:$0xf]
        %v313 = vld [vmem:[%s1 + $0x16c] sm:$0xf]
        %v314 = vld [vmem:[%s1 + $0x170] sm:$0xf]
        %v315 = vld [vmem:[%s1 + $0x174] sm:$0xf]
        %v316 = vld [vmem:[%s1 + $0x178] sm:$0xf]
        %v317 = vld [vmem:[%s1 + $0x17c] sm:$0xf]
        %v318 = vld [vmem:[%s1 + $0x180] sm:$0xf]
        %v319 = vld [vmem:[%s1 + $0x184] sm:$0xf]
        %v320 = vld [vmem:[%s2] sm:$0x1]
        %v322 = vlaneseq
        %v323 = vshrl.u32 %v322, 7
        %v324 = vsub.s32 0, %v323
        %v325 = vrot.slane %v320, %v324
        %v425 = vunpack.c.l.b16 %v222
        %v426 = vunpack.c.l.b16 %v223
        %v427 = vunpack.c.l.b16 %v224
        %v428 = vunpack.c.l.b16 %v225
        %v429 = vunpack.c.l.b16 %v226
        %v430 = vunpack.c.l.b16 %v227
        %v431 = vunpack.c.l.b16 %v228
        %v432 = vunpack.c.l.b16 %v229
        %v433 = vunpack.c.l.b16 %v230
        %v434 = vunpack.c.l.b16 %v231
        %v435 = vunpack.c.l.b16 %v232
        %v436 = vunpack.c.l.b16 %v233
        %v437 = vunpack.c.l.b16 %v234
        %v438 = vunpack.c.l.b16 %v235
        %v439 = vunpack.c.l.b16 %v236
        %v440 = vunpack.c.l.b16 %v237
        %v441 = vunpack.c.l.b16 %v238
        %v442 = vunpack.c.l.b16 %v239
        %v443 = vunpack.c.l.b16 %v240
        %v444 = vunpack.c.l.b16 %v241
        %v445 = vunpack.c.l.b16 %v242
        %v446 = vunpack.c.l.b16 %v243
        %v447 = vunpack.c.l.b16 %v244
        %v448 = vunpack.c.l.b16 %v245
        %v449 = vunpack.c.l.b16 %v246
        %v450 = vunpack.c.l.b16 %v247
        %v451 = vunpack.c.l.b16 %v248
        %v452 = vunpack.c.l.b16 %v249
        %v453 = vunpack.c.l.b16 %v250
        %v454 = vunpack.c.l.b16 %v251
        %v455 = vunpack.c.l.b16 %v252
        %v456 = vunpack.c.l.b16 %v253
        %v457 = vunpack.c.l.b16 %v254
        %v458 = vunpack.c.l.b16 %v255
        %v459 = vunpack.c.l.b16 %v256
        %v460 = vunpack.c.l.b16 %v257
        %v461 = vunpack.c.l.b16 %v258
        %v462 = vunpack.c.l.b16 %v259
        %v463 = vunpack.c.l.b16 %v260
        %v464 = vunpack.c.l.b16 %v261
        %v465 = vunpack.c.l.b16 %v262
        %v466 = vunpack.c.l.b16 %v263
        %v467 = vunpack.c.l.b16 %v264
        %v468 = vunpack.c.l.b16 %v265
        %v469 = vunpack.c.l.b16 %v266
        %v470 = vunpack.c.l.b16 %v267
        %v471 = vunpack.c.l.b16 %v268
        %v472 = vunpack.c.l.b16 %v269
        %v473 = vunpack.c.l.b16 %v270
        %v474 = vunpack.c.l.b16 %v271
        %v475 = vunpack.c.l.b16 %v272
        %v476 = vunpack.c.l.b16 %v273
        %v477 = vunpack.c.l.b16 %v274
        %v478 = vunpack.c.l.b16 %v275
        %v479 = vunpack.c.l.b16 %v276
        %v480 = vunpack.c.l.b16 %v277
        %v481 = vunpack.c.l.b16 %v278
        %v482 = vunpack.c.l.b16 %v279
        %v483 = vunpack.c.l.b16 %v280
        %v484 = vunpack.c.l.b16 %v281
        %v485 = vunpack.c.l.b16 %v282
        %v486 = vunpack.c.l.b16 %v283
        %v487 = vunpack.c.l.b16 %v284
        %v488 = vunpack.c.l.b16 %v285
        %v489 = vunpack.c.l.b16 %v286
        %v490 = vunpack.c.l.b16 %v287
        %v491 = vunpack.c.l.b16 %v288
        %v492 = vunpack.c.l.b16 %v289
        %v493 = vunpack.c.l.b16 %v290
        %v494 = vunpack.c.l.b16 %v291
        %v495 = vunpack.c.l.b16 %v292
        %v496 = vunpack.c.l.b16 %v293
        %v497 = vunpack.c.l.b16 %v294
        %v498 = vunpack.c.l.b16 %v295
        %v499 = vunpack.c.l.b16 %v296
        %v500 = vunpack.c.l.b16 %v297
        %v501 = vunpack.c.l.b16 %v298
        %v502 = vunpack.c.l.b16 %v299
        %v503 = vunpack.c.l.b16 %v300
        %v504 = vunpack.c.l.b16 %v301
        %v505 = vunpack.c.l.b16 %v302
        %v506 = vunpack.c.l.b16 %v303
        %v507 = vunpack.c.l.b16 %v304
        %v508 = vunpack.c.l.b16 %v305
        %v509 = vunpack.c.l.b16 %v306
        %v510 = vunpack.c.l.b16 %v307
        %v511 = vunpack.c.l.b16 %v308
        %v512 = vunpack.c.l.b16 %v309
        %v513 = vunpack.c.l.b16 %v310
        %v514 = vunpack.c.l.b16 %v311
        %v515 = vunpack.c.l.b16 %v312
        %v516 = vunpack.c.l.b16 %v313
        %v517 = vunpack.c.l.b16 %v314
        %v518 = vunpack.c.l.b16 %v315
        %v519 = vunpack.c.l.b16 %v316
        %v520 = vunpack.c.l.b16 %v317
        %v521 = vunpack.c.l.b16 %v318
        %v522 = vunpack.c.l.b16 %v319
        %v523 = vpack.c.b16 %v426, %v425
        %v524 = vpack.c.b16 %v428, %v427
        %v525 = vpack.c.b16 %v430, %v429
        %v526 = vpack.c.b16 %v432, %v431
        %v527 = vpack.c.b16 %v434, %v433
        %v528 = vpack.c.b16 %v436, %v435
        %v529 = vpack.c.b16 %v438, %v437
        %v530 = vpack.c.b16 %v440, %v439
        %v531 = vpack.c.b16 %v442, %v441
        %v532 = vpack.c.b16 %v444, %v443
        %v533 = vpack.c.b16 %v446, %v445
        %v534 = vpack.c.b16 %v448, %v447
        %v535 = vpack.c.b16 %v450, %v449
        %v536 = vpack.c.b16 %v452, %v451
        %v537 = vpack.c.b16 %v454, %v453
        %v538 = vpack.c.b16 %v456, %v455
        %v539 = vpack.c.b16 %v458, %v457
        %v540 = vpack.c.b16 %v460, %v459
        %v541 = vpack.c.b16 %v462, %v461
        %v542 = vpack.c.b16 %v464, %v463
        %v543 = vpack.c.b16 %v466, %v465
        %v544 = vpack.c.b16 %v468, %v467
        %v545 = vpack.c.b16 %v470, %v469
        %v546 = vpack.c.b16 %v472, %v471
        %v547 = vpack.c.b16 %v474, %v473
        %v548 = vpack.c.b16 %v476, %v475
        %v549 = vpack.c.b16 %v478, %v477
        %v550 = vpack.c.b16 %v480, %v479
        %v551 = vpack.c.b16 %v482, %v481
        %v552 = vpack.c.b16 %v484, %v483
        %v553 = vpack.c.b16 %v486, %v485
        %v554 = vpack.c.b16 %v488, %v487
        %v555 = vpack.c.b16 %v490, %v489
        %v556 = vpack.c.b16 %v492, %v491
        %v557 = vpack.c.b16 %v494, %v493
        %v558 = vpack.c.b16 %v496, %v495
        %v559 = vpack.c.b16 %v498, %v497
        %v560 = vpack.c.b16 %v500, %v499
        %v561 = vpack.c.b16 %v502, %v501
        %v562 = vpack.c.b16 %v504, %v503
        %v563 = vpack.c.b16 %v506, %v505
        %v564 = vpack.c.b16 %v508, %v507
        %v565 = vpack.c.b16 %v510, %v509
        %v566 = vpack.c.b16 %v512, %v511
        %v567 = vpack.c.b16 %v514, %v513
        %v568 = vpack.c.b16 %v516, %v515
        %v569 = vpack.c.b16 %v518, %v517
        %v570 = vpack.c.b16 %v520, %v519
        %v571 = vpack.c.b16 %v522, %v521
        %vm621 = vcmask 130048
        %v623 = vsel %vm621, %v221, 0
        %625 = vmatprep.subr.bf16.mxu0 0
        %626 = vmatpush1.bf16.msra.mxu0 %v523
        %627 = vmatprep.subr.bf16.mxu0 0
        %628 = vmatpush1.bf16.msra.mxu0 %v524
        %629 = vmatprep.subr.bf16.mxu0 0
        %630 = vmatpush1.bf16.msra.mxu0 %v525
        %631 = vmatprep.subr.bf16.mxu0 0
        %632 = vmatpush1.bf16.msra.mxu0 %v526
        %633 = vmatprep.subr.bf16.mxu0 0
        %634 = vmatpush1.bf16.msra.mxu0 %v527
        %635 = vmatprep.subr.bf16.mxu0 0
        %636 = vmatpush1.bf16.msra.mxu0 %v528
        %637 = vmatprep.subr.bf16.mxu0 0
        %638 = vmatpush1.bf16.msra.mxu0 %v529
        %639 = vmatprep.subr.bf16.mxu0 0
        %640 = vmatpush1.bf16.msra.mxu0 %v530
        %641 = vmatprep.subr.bf16.mxu0 0
        %642 = vmatpush1.bf16.msra.mxu0 %v531
        %643 = vmatprep.subr.bf16.mxu0 0
        %644 = vmatpush1.bf16.msra.mxu0 %v532
        %645 = vmatprep.subr.bf16.mxu0 0
        %646 = vmatpush1.bf16.msra.mxu0 %v533
        %647 = vmatprep.subr.bf16.mxu0 0
        %648 = vmatpush1.bf16.msra.mxu0 %v534
        %649 = vmatprep.subr.bf16.mxu0 0
        %650 = vmatpush1.bf16.msra.mxu0 %v535
        %651 = vmatprep.subr.bf16.mxu0 0
        %652 = vmatpush1.bf16.msra.mxu0 %v536
        %653 = vmatprep.subr.bf16.mxu0 0
        %654 = vmatpush1.bf16.msra.mxu0 %v537
        %655 = vmatprep.subr.bf16.mxu0 0
        %656 = vmatpush1.bf16.msra.mxu0 %v538
        %657 = vmatprep.mubr.bf16.mxu0 %v216
        %658 = vmatmul.mubr.bf16.gmra.mrb[0].mxu0 %v215
        %v659 = vpop.f32.mrb[0].mxu0
        %v660 = vadd.f32 %v325, %v659
        %v661 = vpop.f32.mrb[0].mxu0
        %v662 = vpop.f32.mrb[0].mxu0
        %v663 = vadd.f32 %v325, %v662
        %v664 = vpop.f32.mrb[0].mxu0
        %665 = vdwg.mxu0
        %666 = vmatprep.subr.bf16.mxu0 0
        %667 = vmatpush1.bf16.msra.mxu0 %v539
        %668 = vmatprep.subr.bf16.mxu0 0
        %669 = vmatpush1.bf16.msra.mxu0 %v540
        %670 = vmatprep.subr.bf16.mxu0 0
        %671 = vmatpush1.bf16.msra.mxu0 %v541
        %672 = vmatprep.subr.bf16.mxu0 0
        %673 = vmatpush1.bf16.msra.mxu0 %v542
        %674 = vmatprep.subr.bf16.mxu0 0
        %675 = vmatpush1.bf16.msra.mxu0 %v543
        %676 = vmatprep.subr.bf16.mxu0 0
        %677 = vmatpush1.bf16.msra.mxu0 %v544
        %678 = vmatprep.subr.bf16.mxu0 0
        %679 = vmatpush1.bf16.msra.mxu0 %v545
        %680 = vmatprep.subr.bf16.mxu0 0
        %681 = vmatpush1.bf16.msra.mxu0 %v546
        %682 = vmatprep.subr.bf16.mxu0 0
        %683 = vmatpush1.bf16.msra.mxu0 %v547
        %684 = vmatprep.subr.bf16.mxu0 0
        %685 = vmatpush1.bf16.msra.mxu0 %v548
        %686 = vmatprep.subr.bf16.mxu0 0
        %687 = vmatpush1.bf16.msra.mxu0 %v549
        %688 = vmatprep.subr.bf16.mxu0 0
        %689 = vmatpush1.bf16.msra.mxu0 %v550
        %690 = vmatprep.subr.bf16.mxu0 0
        %691 = vmatpush1.bf16.msra.mxu0 %v551
        %692 = vmatprep.subr.bf16.mxu0 0
        %693 = vmatpush1.bf16.msra.mxu0 %v552
        %694 = vmatprep.subr.bf16.mxu0 0
        %695 = vmatpush1.bf16.msra.mxu0 %v553
        %696 = vmatprep.subr.bf16.mxu0 0
        %697 = vmatpush1.bf16.msra.mxu0 %v554
        %698 = vmatprep.mubr.bf16.mxu0 %v218
        %699 = vmatmul.mubr.bf16.gmra.mrb[0].mxu0 %v217
        %v700 = vpop.f32.mrb[0].mxu0
        %v701 = vadd.f32 %v660, %v700
        %v702 = vpop.f32.mrb[0].mxu0
        %v703 = vpop.f32.mrb[0].mxu0
        %v704 = vadd.f32 %v663, %v703
        %v705 = vpop.f32.mrb[0].mxu0
        %706 = vdwg.mxu0
        %707 = vmatprep.subr.bf16.mxu0 0
        %708 = vmatpush1.bf16.msra.mxu0 %v555
        %709 = vmatprep.subr.bf16.mxu0 0
        %710 = vmatpush1.bf16.msra.mxu0 %v556
        %711 = vmatprep.subr.bf16.mxu0 0
        %712 = vmatpush1.bf16.msra.mxu0 %v557
        %713 = vmatprep.subr.bf16.mxu0 0
        %714 = vmatpush1.bf16.msra.mxu0 %v558
        %715 = vmatprep.subr.bf16.mxu0 0
        %716 = vmatpush1.bf16.msra.mxu0 %v559
        %717 = vmatprep.subr.bf16.mxu0 0
        %718 = vmatpush1.bf16.msra.mxu0 %v560
        %719 = vmatprep.subr.bf16.mxu0 0
        %720 = vmatpush1.bf16.msra.mxu0 %v561
        %721 = vmatprep.subr.bf16.mxu0 0
        %722 = vmatpush1.bf16.msra.mxu0 %v562
        %723 = vmatprep.subr.bf16.mxu0 0
        %724 = vmatpush1.bf16.msra.mxu0 %v563
        %725 = vmatprep.subr.bf16.mxu0 0
        %726 = vmatpush1.bf16.msra.mxu0 %v564
        %727 = vmatprep.subr.bf16.mxu0 0
        %728 = vmatpush1.bf16.msra.mxu0 %v565
        %729 = vmatprep.subr.bf16.mxu0 0
        %730 = vmatpush1.bf16.msra.mxu0 %v566
        %731 = vmatprep.subr.bf16.mxu0 0
        %732 = vmatpush1.bf16.msra.mxu0 %v567
        %733 = vmatprep.subr.bf16.mxu0 0
        %734 = vmatpush1.bf16.msra.mxu0 %v568
        %735 = vmatprep.subr.bf16.mxu0 0
        %736 = vmatpush1.bf16.msra.mxu0 %v569
        %737 = vmatprep.subr.bf16.mxu0 0
        %738 = vmatpush1.bf16.msra.mxu0 %v570
        %739 = vmatprep.mubr.bf16.mxu0 %v220
        %740 = vmatmul.mubr.bf16.gmra.mrb[0].mxu0 %v219
        %v741 = vpop.f32.mrb[0].mxu0
        %v742 = vadd.f32 %v701, %v741
        %v743 = vpop.f32.mrb[0].mxu0
        %v744 = vpop.f32.mrb[0].mxu0
        %v745 = vadd.f32 %v704, %v744
        %v746 = vpop.f32.mrb[0].mxu0
        %747 = vdwg.mxu0
        %748 = vmatprep.subr.bf16.mxu0 0
        %749 = vmatpush1.bf16.msra.mxu0 %v571
        %750 = vmatprep.subr.bf16.mxu0 0
        %751 = vmatpush1.bf16.msra.mxu0 0
        %752 = vmatprep.subr.bf16.mxu0 0
        %753 = vmatpush1.bf16.msra.mxu0 0
        %754 = vmatprep.subr.bf16.mxu0 0
        %755 = vmatpush1.bf16.msra.mxu0 0
        %756 = vmatprep.subr.bf16.mxu0 0
        %757 = vmatpush1.bf16.msra.mxu0 0
        %758 = vmatprep.subr.bf16.mxu0 0
        %759 = vmatpush1.bf16.msra.mxu0 0
        %760 = vmatprep.subr.bf16.mxu0 0
        %761 = vmatpush1.bf16.msra.mxu0 0
        %762 = vmatprep.subr.bf16.mxu0 0
        %763 = vmatpush1.bf16.msra.mxu0 0
        %764 = vmatprep.subr.bf16.mxu0 0
        %765 = vmatpush1.bf16.msra.mxu0 0
        %766 = vmatprep.subr.bf16.mxu0 0
        %767 = vmatpush1.bf16.msra.mxu0 0
        %768 = vmatprep.subr.bf16.mxu0 0
        %769 = vmatpush1.bf16.msra.mxu0 0
        %770 = vmatprep.subr.bf16.mxu0 0
        %771 = vmatpush1.bf16.msra.mxu0 0
        %772 = vmatprep.subr.bf16.mxu0 0
        %773 = vmatpush1.bf16.msra.mxu0 0
        %774 = vmatprep.subr.bf16.mxu0 0
        %775 = vmatpush1.bf16.msra.mxu0 0
        %776 = vmatprep.subr.bf16.mxu0 0
        %777 = vmatpush1.bf16.msra.mxu0 0
        %778 = vmatprep.subr.bf16.mxu0 0
        %779 = vmatpush1.bf16.msra.mxu0 0
        %780 = vmatprep.mubr.bf16.mxu0 0
        %781 = vmatmul.mubr.bf16.gmra.mrb[0].mxu0 %v623
        %v782 = vpop.f32.mrb[0].mxu0
        %v783 = vadd.f32 %v742, %v782
        %v784 = vpop.f32.mrb[0].mxu0
        %v785 = vpop.f32.mrb[0].mxu0
        %v786 = vadd.f32 %v745, %v785
        %v787 = vpop.f32.mrb[0].mxu0
        %788 = vdwg.mxu0
        %789 = vmax.xlane.f32.xlu0 %v783
        %v790 = vpop.xlane.xlu0 %789
        %791 = vmax.xlane.f32.xlu0 %v786
        %v792 = vpop.xlane.xlu0 %791
        %v793 = vsub.f32 %v783, %v790
        %v794 = vsub.f32 %v786, %v792
        %v795 = vmul.f32 %v793, 1.442695
        %v796 = vpow.pop %v795
        %v797 = vmul.f32 %v794, 1.442695
        %v798 = vpow.pop %v797
        %799 = vadd.xlane.f32.xlu0 %v796
        %v800 = vpop.xlane.xlu0 %799
        %801 = vadd.xlane.f32.xlu0 %v798
        %v802 = vpop.xlane.xlu0 %801
        %v803 = vrcp.pop %v800
        %v804 = vrcp.pop %v802
        %v805 = vmul.f32 %v796, %v803
        %v806 = vmul.f32 %v798, %v804
        %v807 = vpack.c.bf16 %v806, %v805
        %v809 = vunpack.c.l.b16 %v807
        %v810 = vunpack.c.h.b16 %v807
        %v811 = vpack.c.b16 %v809, %v809
        %v812 = vpack.c.b16 %v810, %v810
        %815 = vst [vmem:[%s177] sm:$0xf] %v811
        %816 = vst [vmem:[%s177 + $0x4] sm:$0xf] %v812
        %s817 = sand.u32 %s90, 1
        %s818 = sand.u32 %s90, 1
        %s819 = smul.addr %s818, 8
        %s820 = scalar_lea.vmem [#allocation2], %s819
        // Predicated region
        $region33: #{one_layer_forward.1} parent=31 // pred_check
          %p821 = pneg %p100
        $region34: #{one_layer_forward.1} parent=31 // pred_check_branch
          %823 = sbr.rel (%p821) target = $region36
        $region35: #{one_layer_forward.1} parent=31 // pred_region
          %s824 = smul.u32 2, %s14
          %s825 = ssub.s32 3, %s824
          %p826 = scmp.lt.s32.totalorder %s825, 2
          %s827 = scalar_select %p826, %s825, 2
          %s828 = smul.u32 64, %s827
          %p829 = scmp.ne.s32.totalorder 0, %s828
          %s830 = smul.addr %s824, 4
          %s831 = scalar_lea.vmem %s3, %s830
          // Predicated region
          $region37: #{one_layer_forward.1} parent=35 // pred_check
            %p832 = pneg %p829
          $region38: #{one_layer_forward.1} parent=35 // pred_check_branch
            %834 = sbr.rel (%p832) target = $region40
          $region39: #{one_layer_forward.1} parent=35 // pred_region
            // Predicated region
            $region41: #{one_layer_forward.1} parent=39 // pred_check
              _
            $region42: #{one_layer_forward.1} parent=39 // pred_check_branch
              %836 = sbr.rel target = $region44
            $region43: #{one_layer_forward.1} parent=39 // pred_region
              // Predicated region
              $region63: #{one_layer_forward.1} parent=43 // pred_check
                _
              $region64: #{one_layer_forward.1} parent=43 // pred_check_branch
                %887 = sbr.rel (0) target = $region66
              $region65: #{one_layer_forward.1} parent=43 // pred_region
                %s889 = sshrl.u32 %s827, 1
                // While loop
                $region67: #{one_layer_forward.1} parent=65 // loop_pre_header
                  _
                $region68: #{one_layer_forward.1} parent=65 // loop_header
                  %s891 = sphi 0, %s893
                  %p892 = scmp.ge.s32.totalorder %s891, %s889
                  %s896 = sphi 0, %s905
                  %s897 = sphi %s820, %s908
                  %s898 = sphi %s831, %s909
                $region69: #{one_layer_forward.1} parent=65 // loop_header_branch
                  %895 = sbr.rel (%p892) target = $region73
                $region70: #{one_layer_forward.1} parent=65 // loop_body
                  %v899 = vld [vmem:[%s897] sm:$0xf]
                  %900 = vst [vmem:[%s898] sm:$0xf] %v899
                  %v901 = vld [vmem:[%s897 + $0x4] sm:$0xf]
                  %902 = vst [vmem:[%s898 + $0x4] sm:$0xf] %v901
                  %s903 = sadd.s32 1, %s896
                  %p904 = scmp.ge.s32.totalorder %s903, %s889
                  %s905 = scalar_select %p904, 0, %s903
                  %s906 = smul.u32 %s905, 8
                  %s907 = smul.u32 %s905, 8
                  %s908 = scalar_lea.vmem %s820, %s906 [#allocation2]
                  %s909 = scalar_lea.vmem %s831, %s907
                $region71: #{one_layer_forward.1} parent=65 // loop_footer
                  %s893 = sadd.s32 %s891, 1
                $region72: #{one_layer_forward.1} parent=65 // loop_footer_branch
                  %890 = sbr.rel target = $region68
                $region73: #{one_layer_forward.1} parent=65 // loop_exit
                  _
                %s910 = sshrl.u32 %s827, 1
                %s911 = sand.u32 %s827, 1
                %s912 = smul.u32 %s910, 2
                %s913 = smul.u32 4, %s912
                %s914 = scalar_lea.vmem %s820, %s913 [#allocation2]
                %s915 = smul.u32 4, %s912
                %s916 = scalar_lea.vmem %s831, %s915
                // While loop
                $region74: #{one_layer_forward.1} parent=65 // loop_pre_header
                  _
                $region75: #{one_layer_forward.1} parent=65 // loop_header
                  %s918 = sphi 0, %s920
                  %p919 = scmp.ge.s32.totalorder %s918, %s911
                  %s923 = sphi 0, %s930
                  %s924 = sphi %s914, %s933
                  %s925 = sphi %s916, %s934
                $region76: #{one_layer_forward.1} parent=65 // loop_header_branch
                  %922 = sbr.rel (%p919) target = $region80
                $region77: #{one_layer_forward.1} parent=65 // loop_body
                  %v926 = vld [vmem:[%s924] sm:$0xf]
                  %927 = vst [vmem:[%s925] sm:$0xf] %v926
                  %s928 = sadd.s32 1, %s923
                  %p929 = scmp.ge.s32.totalorder %s928, %s911
                  %s930 = scalar_select %p929, 0, %s928
                  %s931 = smul.u32 %s930, 4
                  %s932 = smul.u32 %s930, 4
                  %s933 = scalar_lea.vmem %s914, %s931 [#allocation2]
                  %s934 = scalar_lea.vmem %s916, %s932
                $region78: #{one_layer_forward.1} parent=65 // loop_footer
                  %s920 = sadd.s32 %s918, 1
                $region79: #{one_layer_forward.1} parent=65 // loop_footer_branch
                  %917 = sbr.rel target = $region75
                $region80: #{one_layer_forward.1} parent=65 // loop_exit
                  _
              $region66: #{one_layer_forward.1} parent=43 // pred_fallthru
                _
            $region44: #{one_layer_forward.1} parent=39 // pred_fallthru
              _
            // Predicated region
            $region45: #{one_layer_forward.1} parent=39 // pred_check
              _
            $region46: #{one_layer_forward.1} parent=39 // pred_check_branch
              %838 = sbr.rel (0) target = $region48
            $region47: #{one_layer_forward.1} parent=39 // pred_region
              %s840 = sshrl.u32 %s827, 1
              // While loop
              $region49: #{one_layer_forward.1} parent=47 // loop_pre_header
                _
              $region50: #{one_layer_forward.1} parent=47 // loop_header
                %s842 = sphi 0, %s844
                %p843 = scmp.ge.s32.totalorder %s842, %s840
                %s847 = sphi 0, %s856
                %s848 = sphi %s820, %s859
                %s849 = sphi %s831, %s860
              $region51: #{one_layer_forward.1} parent=47 // loop_header_branch
                %846 = sbr.rel (%p843) target = $region55
              $region52: #{one_layer_forward.1} parent=47 // loop_body
                %v850 = vld [vmem:[%s848] sm:$0xf]
                %851 = vst [vmem:[%s849] sm:$0xf] %v850
                %v852 = vld [vmem:[%s848 + $0x4] sm:$0xf]
                %853 = vst [vmem:[%s849 + $0x4] sm:$0xf] %v852
                %s854 = sadd.s32 1, %s847
                %p855 = scmp.ge.s32.totalorder %s854, %s840
                %s856 = scalar_select %p855, 0, %s854
                %s857 = smul.u32 %s856, 8
                %s858 = smul.u32 %s856, 8
                %s859 = scalar_lea.vmem %s820, %s857 [#allocation2]
                %s860 = scalar_lea.vmem %s831, %s858
              $region53: #{one_layer_forward.1} parent=47 // loop_footer
                %s844 = sadd.s32 %s842, 1
              $region54: #{one_layer_forward.1} parent=47 // loop_footer_branch
                %841 = sbr.rel target = $region50
              $region55: #{one_layer_forward.1} parent=47 // loop_exit
                _
              %s861 = sshrl.u32 %s827, 1
              %s862 = sand.u32 %s827, 1
              %s863 = smul.u32 %s861, 2
              %s864 = smul.u32 4, %s863
              %s865 = scalar_lea.vmem %s820, %s864 [#allocation2]
              %s866 = smul.u32 4, %s863
              %s867 = scalar_lea.vmem %s831, %s866
              // While loop
              $region56: #{one_layer_forward.1} parent=47 // loop_pre_header
                _
              $region57: #{one_layer_forward.1} parent=47 // loop_header
                %s869 = sphi 0, %s871
                %p870 = scmp.ge.s32.totalorder %s869, %s862
                %s874 = sphi 0, %s881
                %s875 = sphi %s865, %s884
                %s876 = sphi %s867, %s885
              $region58: #{one_layer_forward.1} parent=47 // loop_header_branch
                %873 = sbr.rel (%p870) target = $region62
              $region59: #{one_layer_forward.1} parent=47 // loop_body
                %v877 = vld [vmem:[%s875] sm:$0xf]
                %878 = vst [vmem:[%s876] sm:$0xf] %v877
                %s879 = sadd.s32 1, %s874
                %p880 = scmp.ge.s32.totalorder %s879, %s862
                %s881 = scalar_select %p880, 0, %s879
                %s882 = smul.u32 %s881, 4
                %s883 = smul.u32 %s881, 4
                %s884 = scalar_lea.vmem %s865, %s882 [#allocation2]
                %s885 = scalar_lea.vmem %s867, %s883
              $region60: #{one_layer_forward.1} parent=47 // loop_footer
                %s871 = sadd.s32 %s869, 1
              $region61: #{one_layer_forward.1} parent=47 // loop_footer_branch
                %868 = sbr.rel target = $region57
              $region62: #{one_layer_forward.1} parent=47 // loop_exit
                _
            $region48: #{one_layer_forward.1} parent=39 // pred_fallthru
              _
          $region40: #{one_layer_forward.1} parent=35 // pred_fallthru
            _
          %935 = vnop
        $region36: #{one_layer_forward.1} parent=31 // pred_fallthru
          _
      $region32: #{one_layer_forward.1} parent=5 // pred_fallthru
        _
      %p936 = scmp.le.s32.totalorder 2, %s9
      // Predicated region
      $region81: #{one_layer_forward.1} parent=5 // pred_check
        %p937 = pneg %p936
      $region82: #{one_layer_forward.1} parent=5 // pred_check_branch
        %939 = sbr.rel (%p937) target = $region84
      $region83: #{one_layer_forward.1} parent=5 // pred_region
        %s940 = ssub.s32 %s9, 2
        // Predicated region
        $region85: #{one_layer_forward.1} parent=83 // pred_check
          %p941 = pneg %p106
        $region86: #{one_layer_forward.1} parent=83 // pred_check_branch
          %943 = sbr.rel (%p941) target = $region88
        $region87: #{one_layer_forward.1} parent=83 // pred_region
          %s944 = sand.u32 %s91, 1
          %s945 = sand.u32 %s91, 1
          %s946 = smul.addr %s945, 8
          %s947 = scalar_lea.vmem [#allocation2], %s946
        $region88: #{one_layer_forward.1} parent=83 // pred_fallthru
          _
      $region84: #{one_layer_forward.1} parent=5 // pred_fallthru
        _
    $region6: #{one_layer_forward.1} parent=1 // loop_footer
      %s13 = sadd.s32 1, %s9
    $region7: #{one_layer_forward.1} parent=1 // loop_footer_branch
      %8 = sbr.rel target = $region3
    $region8: #{one_layer_forward.1} parent=1 // loop_exit
      _

</llo_original>
